<compile_context>
chip_gen: v5e
topology: v5e:2x2
jax: 0.10.0
libtpu: 0.0.40
codegen_flags: <defaults>
</compile_context>

<pallas_src>
import functools

import jax
import jax.numpy as jnp
from jax.experimental import pallas as pl
from jax.experimental.pallas import tpu as pltpu

NEG_INF = -1e9  # matches masked_fill(mask == 0, -1000000000.0)


# ----------------------------------------------------------------------------
# helpers
# ----------------------------------------------------------------------------
@functools.lru_cache(maxsize=1)
def _vmem_limit_bytes():
    try:
        cap = int(pltpu.get_tpu_info().vmem_capacity_bytes)
        return min((cap * 3) // 4, 100 * 1024 * 1024)
    except Exception:
        return 48 * 1024 * 1024  # conservative (safe even on v7x's 64 MiB)


def _cparams(dims):
    return pltpu.CompilerParams(dimension_semantics=dims,
                                vmem_limit_bytes=_vmem_limit_bytes())


def _pick_block(n, want, align):
    """Largest divisor of n that is <= want and a multiple of `align`, else n."""
    if n <= want:
        return n
    c = (want // align) * align
    while c >= align:
        if n % c == 0:
            return c
        c -= align
    # TODO(synk): pad + mask instead of falling back to one full-extent block.
    return n


# ----------------------------------------------------------------------------
# Dense (linear) kernels -- row-tiled, pipelined, bf16 MXU operands, f32 acc
# ----------------------------------------------------------------------------
def _dense_kernel(x_ref, w_ref, b_ref, o_ref):
    x = x_ref[...].astype(jnp.bfloat16)
    y = jnp.dot(x, w_ref[...], preferred_element_type=jnp.float32)
    o_ref[...] = (y + b_ref[...]).astype(o_ref.dtype)


def pallas_dense(x, w, b, out_dtype=jnp.float32, block_rows=512):
    """x: (..., d_in) @ w: (d_in, d_out) + b: (d_out,) -> (..., d_out)."""
    shp = x.shape
    d_in = shp[-1]
    d_out = w.shape[1]
    x2 = x.reshape(-1, d_in)
    n = x2.shape[0]
    br = _pick_block(n, block_rows, 8)
    y = pl.pallas_call(
        _dense_kernel,
        grid=(n // br,),
        in_specs=[
            pl.BlockSpec((br, d_in), lambda i: (i, 0)),
            pl.BlockSpec((d_in, d_out), lambda i: (0, 0)),
            pl.BlockSpec((1, d_out), lambda i: (0, 0)),
        ],
        out_specs=pl.BlockSpec((br, d_out), lambda i: (i, 0)),
        out_shape=jax.ShapeDtypeStruct((n, d_out), out_dtype),
        compiler_params=_cparams(("parallel",)),
    )(x2, w, b.reshape(1, d_out))
    return y.reshape(shp[:-1] + (d_out,))


def _dense2_kernel(xa_ref, xb_ref, wa_ref, wb_ref, b_ref, o_ref):
    ya = jnp.dot(xa_ref[...].astype(jnp.bfloat16), wa_ref[...],
                 preferred_element_type=jnp.float32)
    yb = jnp.dot(xb_ref[...].astype(jnp.bfloat16), wb_ref[...],
                 preferred_element_type=jnp.float32)
    o_ref[...] = (ya + yb + b_ref[...]).astype(o_ref.dtype)


def pallas_dense_concat(xa, xb, wa, wb, b, out_dtype=jnp.float32, block_rows=512):
    """[xa | xb] @ [[wa],[wb]] + b without materializing the concat in HBM."""
    shp = xa.shape
    da, db = xa.shape[-1], xb.shape[-1]
    d_out = wa.shape[1]
    xa2 = xa.reshape(-1, da)
    xb2 = xb.reshape(-1, db)
    n = xa2.shape[0]
    br = _pick_block(n, block_rows, 8)
    y = pl.pallas_call(
        _dense2_kernel,
        grid=(n // br,),
        in_specs=[
            pl.BlockSpec((br, da), lambda i: (i, 0)),
            pl.BlockSpec((br, db), lambda i: (i, 0)),
            pl.BlockSpec((da, d_out), lambda i: (0, 0)),
            pl.BlockSpec((db, d_out), lambda i: (0, 0)),
            pl.BlockSpec((1, d_out), lambda i: (0, 0)),
        ],
        out_specs=pl.BlockSpec((br, d_out), lambda i: (i, 0)),
        out_shape=jax.ShapeDtypeStruct((n, d_out), out_dtype),
        compiler_params=_cparams(("parallel",)),
    )(xa2, xb2, wa, wb, b.reshape(1, d_out))
    return y.reshape(shp[:-1] + (d_out,))


# ----------------------------------------------------------------------------
# Fused absolute-position projections: content cols + per-head positional
# projections, written as one lane-dense (rows, La*d_k) block.
# ----------------------------------------------------------------------------
def _abs_pos_proj_kernel(*refs, La):
    x_ref = refs[0]
    ak_refs = refs[1:1 + La]
    wc_ref = refs[1 + La]
    wp_refs = refs[2 + La:2 + 2 * La]
    b_ref = refs[2 + 2 * La]
    o_ref = refs[3 + 2 * La]

    x = x_ref[...].astype(jnp.bfloat16)
    y = jnp.dot(x, wc_ref[...], preferred_element_type=jnp.float32)
    pos = [jnp.dot(ak_refs[i][...].astype(jnp.bfloat16), wp_refs[i][...],
                   preferred_element_type=jnp.float32) for i in range(La)]
    y = y + jnp.concatenate(pos, axis=-1) + b_ref[...]
    o_ref[...] = y.astype(o_ref.dtype)


def pallas_abs_pos_proj(x, ak_list, wc, wp_list, b, *, La, d_k, block_rows=512):
    B, T, d_model = x.shape
    Da = La * d_k
    n = B * T
    br = _pick_block(n, block_rows, 8)
    x2 = x.reshape(n, d_model)
    ak2 = [a.reshape(n, d_model) for a in ak_list]
    in_specs = ([pl.BlockSpec((br, d_model), lambda i: (i, 0))] * (1 + La)
                + [pl.BlockSpec((d_model, Da), lambda i: (0, 0))]
                + [pl.BlockSpec((d_model, d_k), lambda i: (0, 0))] * La
                + [pl.BlockSpec((1, Da), lambda i: (0, 0))])
    y = pl.pallas_call(
        functools.partial(_abs_pos_proj_kernel, La=La),
        grid=(n // br,),
        in_specs=in_specs,
        out_specs=pl.BlockSpec((br, Da), lambda i: (i, 0)),
        out_shape=jax.ShapeDtypeStruct((n, Da), jnp.bfloat16),
        compiler_params=_cparams(("parallel",)),
    )(x2, *ak2, wc, *wp_list, b.reshape(1, Da))
    return y.reshape(B, T, Da)


# ----------------------------------------------------------------------------
# Relative-position R projection, written transposed / lane-dense:
#   R_t[b, d, i, j] = rel_kernel[b, i, j, :] @ W[:, d] + bias[d]   (bf16)
# so the attention kernel can read contiguous (bq, bk) slabs per feature d.
# ----------------------------------------------------------------------------
def _rel_r_proj_kernel(x_ref, wt_ref, b_ref, o_ref, *, bi):
    wt = wt_ref[...]          # (d_k, d_model) bf16
    bcol = b_ref[...]         # (d_k, 1) f32
    for i in range(bi):
        xi = x_ref[0, i].astype(jnp.bfloat16)               # (Tk, d_model)
        yt = jax.lax.dot_general(wt, xi, (((1,), (1,)), ((), ())),
                                 preferred_element_type=jnp.float32)  # (d_k, Tk)
        o_ref[0, :, i, :] = (yt + bcol).astype(o_ref.dtype)


def pallas_rel_r_proj(relk, w, b, *, d_k, max_rows=8):
    B, Tq, Tk, d_model = relk.shape
    wt = w.T.astype(jnp.bfloat16)                     # (d_k, d_model)
    bcol = b.reshape(d_k, 1).astype(jnp.float32)
    if Tq % 8 == 0:
        budget = max(8, int((8 << 20) // max(1, Tk * d_model * relk.dtype.itemsize)))
        cap = max(8, (min(max_rows, budget, Tq) // 8) * 8)
        bi = 8
        c = cap
        while c >= 8:
            if Tq % c == 0:
                bi = c
                break
            c -= 8
    else:
        bi = Tq  # TODO(synk): pad Tq to a multiple of 8 instead.
    grid = (B, Tq // bi)
    return pl.pallas_call(
        functools.partial(_rel_r_proj_kernel, bi=bi),
        grid=grid,
        in_specs=[
            pl.BlockSpec((1, bi, Tk, d_model), lambda bb, ib: (bb, ib, 0, 0)),
            pl.BlockSpec((d_k, d_model), lambda bb, ib: (0, 0)),
            pl.BlockSpec((d_k, 1), lambda bb, ib: (0, 0)),
        ],
        out_specs=pl.BlockSpec((1, d_k, bi, Tk), lambda bb, ib: (bb, 0, ib, 0)),
        out_shape=jax.ShapeDtypeStruct((B, d_k, Tq, Tk), jnp.bfloat16),
        compiler_params=_cparams(("parallel", "parallel")),
    )(relk, wt, bcol)


# ----------------------------------------------------------------------------
# Absolute-position heads: flash attention over (q-block, kv-block) grid.
# q already contains (Xq+Pq)*scale, k contains (Xk+Pk).
# ----------------------------------------------------------------------------
def _mh_flash_kernel(q_ref, k_ref, v_ref, mask_ref, o_ref, m_ref, l_ref, acc_ref,
                     *, n_heads, d_k):
    kv = pl.program_id(2)

    @pl.when(kv == 0)
    def _():
        m_ref[...] = jnp.full(m_ref.shape, -jnp.inf, m_ref.dtype)
        l_ref[...] = jnp.zeros(l_ref.shape, l_ref.dtype)
        acc_ref[...] = jnp.zeros(acc_ref.shape, acc_ref.dtype)

    q = q_ref[0]          # (bq, D) bf16
    k = k_ref[0]          # (bk, D) bf16
    v = v_ref[0]          # (bk, D) bf16
    msk = mask_ref[0]     # (bq, bk) bf16, 0/1

    for i in range(n_heads):
        sl = slice(i * d_k, (i + 1) * d_k)
        s = jax.lax.dot_general(q[:, sl], k[:, sl], (((1,), (1,)), ((), ())),
                                preferred_element_type=jnp.float32)  # (bq, bk)
        s = jnp.where(msk == 0, NEG_INF, s)
        m_prev = m_ref[i]
        m_new = jnp.maximum(m_prev, jnp.max(s, axis=-1, keepdims=True))
        alpha = jnp.exp(m_prev - m_new)
        p = jnp.exp(s - m_new)
        # TODO(synk): attention dropout on p omitted (inference mode / p = 0).
        l_ref[i] = alpha * l_ref[i] + jnp.sum(p, axis=-1, keepdims=True)
        acc_ref[:, sl] = alpha * acc_ref[:, sl] + jnp.dot(
            p.astype(v.dtype), v[:, sl], preferred_element_type=jnp.float32)
        m_ref[i] = m_new

    @pl.when(kv == pl.num_programs(2) - 1)
    def _():
        parts = []
        for i in range(n_heads):
            sl = slice(i * d_k, (i + 1) * d_k)
            parts.append(acc_ref[:, sl] * pl.reciprocal(l_ref[i], approx=False))
        o_ref[0] = jnp.concatenate(parts, axis=-1).astype(o_ref.dtype)


def pallas_mh_flash_attention(q, k, v, mask_b, *, n_heads, d_k,
                              block_q=128, block_k=128):
    B, T, D = q.shape
    bq = _pick_block(T, block_q, 8)
    bk = _pick_block(T, block_k, 128)
    grid = (B, T // bq, T // bk)
    qspec = pl.BlockSpec((1, bq, D), lambda b, qi, kv: (b, qi, 0))
    kspec = pl.BlockSpec((1, bk, D), lambda b, qi, kv: (b, kv, 0))
    mspec = pl.BlockSpec((1, bq, bk), lambda b, qi, kv: (b, qi, kv))
    ospec = pl.BlockSpec((1, bq, D), lambda b, qi, kv: (b, qi, 0))
    return pl.pallas_call(
        functools.partial(_mh_flash_kernel, n_heads=n_heads, d_k=d_k),
        grid=grid,
        in_specs=[qspec, kspec, kspec, mspec],
        out_specs=ospec,
        out_shape=jax.ShapeDtypeStruct((B, T, D), jnp.bfloat16),
        scratch_shapes=[
            pltpu.VMEM((n_heads, bq, 1), jnp.float32),   # running max
            pltpu.VMEM((n_heads, bq, 1), jnp.float32),   # running denom
            pltpu.VMEM((bq, D), jnp.float32),            # lane-dense numerator
        ],
        compiler_params=_cparams(("parallel", "parallel", "arbitrary")),
    )(q, k, v, mask_b)


# ----------------------------------------------------------------------------
# Relative-position heads: flash attention + lane-dense R multiply-add term.
# q contains Xq*scale, qb contains (Xq+rel_bias)*scale, r[j] is (B,d_k,T,T).
# ----------------------------------------------------------------------------
def _rel_flash_kernel(q_ref, qb_ref, k_ref, v_ref, mask_ref, *rest, Lr, d_k):
    r_refs = rest[:Lr]
    o_ref = rest[Lr]
    m_ref, l_ref, acc_ref = rest[Lr + 1], rest[Lr + 2], rest[Lr + 3]

    kv = pl.program_id(2)

    @pl.when(kv == 0)
    def _():
        m_ref[...] = jnp.full(m_ref.shape, -jnp.inf, m_ref.dtype)
        l_ref[...] = jnp.zeros(l_ref.shape, l_ref.dtype)
        acc_ref[...] = jnp.zeros(acc_ref.shape, acc_ref.dtype)

    q = q_ref[0]          # (bq, Dr) bf16 (pre-scaled)
    qb = qb_ref[0]        # (bq, Dr) bf16 (pre-scaled, + rel bias)
    k = k_ref[0]          # (bk, Dr) bf16
    v = v_ref[0]          # (bk, Dr) bf16
    msk = mask_ref[0]     # (bq, bk) bf16, 0/1

    for j in range(Lr):
        sl = slice(j * d_k, (j + 1) * d_k)
        s = jax.lax.dot_general(q[:, sl], k[:, sl], (((1,), (1,)), ((), ())),
                                preferred_element_type=jnp.float32)  # (bq, bk)
        # relative-position term: lane-dense (bq, bk) multiply-adds, no f32 R copy
        qbj = qb[:, sl].astype(jnp.float32)                           # (bq, d_k)
        r_ref = r_refs[j]
        for d in range(d_k):
            s = s + qbj[:, d:d + 1] * r_ref[0, d]                     # (bq, bk)
        s = jnp.where(msk == 0, NEG_INF, s)

        m_prev = m_ref[j]
        m_new = jnp.maximum(m_prev, jnp.max(s, axis=-1, keepdims=True))
        alpha = jnp.exp(m_prev - m_new)
        p = jnp.exp(s - m_new)
        # TODO(synk): attention dropout on p omitted (inference mode / p = 0).
        l_ref[j] = alpha * l_ref[j] + jnp.sum(p, axis=-1, keepdims=True)
        acc_ref[:, sl] = alpha * acc_ref[:, sl] + jnp.dot(
            p.astype(v.dtype), v[:, sl], preferred_element_type=jnp.float32)
        m_ref[j] = m_new

    @pl.when(kv == pl.num_programs(2) - 1)
    def _():
        parts = []
        for j in range(Lr):
            sl = slice(j * d_k, (j + 1) * d_k)
            parts.append(acc_ref[:, sl] * pl.reciprocal(l_ref[j], approx=False))
        o_ref[0] = jnp.concatenate(parts, axis=-1).astype(o_ref.dtype)


def pallas_rel_flash_attention(q, qb, k, v, r_list, mask_b, *, Lr, d_k,
                               block_q=128, block_k=128):
    B, T, Dr = q.shape
    bq = _pick_block(T, block_q, 8)
    bk = _pick_block(T, block_k, 128)
    grid = (B, T // bq, T // bk)
    qspec = pl.BlockSpec((1, bq, Dr), lambda b, qi, kv: (b, qi, 0))
    kspec = pl.BlockSpec((1, bk, Dr), lambda b, qi, kv: (b, kv, 0))
    mspec = pl.BlockSpec((1, bq, bk), lambda b, qi, kv: (b, qi, kv))
    rspec = pl.BlockSpec((1, d_k, bq, bk), lambda b, qi, kv: (b, 0, qi, kv))
    ospec = pl.BlockSpec((1, bq, Dr), lambda b, qi, kv: (b, qi, 0))
    return pl.pallas_call(
        functools.partial(_rel_flash_kernel, Lr=Lr, d_k=d_k),
        grid=grid,
        in_specs=[qspec, qspec, kspec, kspec, mspec] + [rspec] * Lr,
        out_specs=ospec,
        out_shape=jax.ShapeDtypeStruct((B, T, Dr), jnp.bfloat16),
        scratch_shapes=[
            pltpu.VMEM((Lr, bq, 1), jnp.float32),   # running max
            pltpu.VMEM((Lr, bq, 1), jnp.float32),   # running denom
            pltpu.VMEM((bq, Dr), jnp.float32),      # lane-dense numerator
        ],
        compiler_params=_cparams(("parallel", "parallel", "arbitrary")),
    )(q, qb, k, v, mask_b, *r_list)


# ----------------------------------------------------------------------------
# MixedAttention forward (glue in JAX, hot paths in Pallas)
# ----------------------------------------------------------------------------
def mixed_attention_forward(params, query, key, value, mask, abs_kernel,
                            rel_kernel, La, Lr):
    B, T, d_model = query.shape
    h = La + Lr
    d_k = d_model // h
    Da, Dr = La * d_k, Lr * d_k
    scale = 1.0 / (d_k ** 0.5)
    bf16 = jnp.bfloat16

    (Wq, bq_c), (Wk, bk_c), (Wv, bv) = params["content"]

    # 0/1 mask as a tiny bf16 tensor; expanded in-kernel with jnp.where.
    mask_b = (mask[:, 0] != 0).astype(bf16)

    out_abs = None
    out_rel = None

    if La > 0:
        # q side: scale folded into weights/biases; Pq fused into the projection
        wq_abs = (Wq[:, :Da] * scale).astype(bf16)
        wpq = [(w * scale).astype(bf16) for (w, _) in params["abs_q"]]
        bq_abs = (bq_c[:Da] + jnp.concatenate([b for (_, b) in params["abs_q"]])) * scale
        q_abs = pallas_abs_pos_proj(query, abs_kernel, wq_abs, wpq, bq_abs,
                                    La=La, d_k=d_k)

        wk_abs = Wk[:, :Da].astype(bf16)
        wpk = [w.astype(bf16) for (w, _) in params["abs_k"]]
        bk_abs = bk_c[:Da] + jnp.concatenate([b for (_, b) in params["abs_k"]])
        k_abs = pallas_abs_pos_proj(key, abs_kernel, wk_abs, wpk, bk_abs,
                                    La=La, d_k=d_k)

        v_abs = pallas_dense(value, Wv[:, :Da].astype(bf16), bv[:Da], out_dtype=bf16)

        out_abs = pallas_mh_flash_attention(q_abs, k_abs, v_abs, mask_b,
                                            n_heads=La, d_k=d_k)

    if Lr > 0:
        q_rel = pallas_dense(query, (Wq[:, Da:] * scale).astype(bf16),
                             bq_c[Da:] * scale, out_dtype=bf16)
        k_rel = pallas_dense(key, Wk[:, Da:].astype(bf16), bk_c[Da:], out_dtype=bf16)
        v_rel = pallas_dense(value, Wv[:, Da:].astype(bf16), bv[Da:], out_dtype=bf16)

        rel_bias_scaled = params["rel_bias"].reshape(1, 1, Dr).astype(jnp.float32) * scale
        qb_rel = (q_rel.astype(jnp.float32) + rel_bias_scaled).astype(bf16)

        r_list = [
            pallas_rel_r_proj(rel_kernel[j], params["rel_k"][j][0],
                              params["rel_k"][j][1], d_k=d_k)
            for j in range(Lr)
        ]
        out_rel = pallas_rel_flash_attention(q_rel, qb_rel, k_rel, v_rel, r_list,
                                             mask_b, Lr=Lr, d_k=d_k)

    # TODO(synk): the `info['attn_...'] = p_attn` side output is not produced
    # (p_attn is never materialized in the flash formulation).
    Wo, bo = params["out"]
    if out_abs is not None and out_rel is not None:
        return pallas_dense_concat(out_abs, out_rel, Wo[:Da].astype(bf16),
                                   Wo[Da:].astype(bf16), bo)
    if out_abs is not None:
        return pallas_dense(out_abs, Wo.astype(bf16), bo)
    return pallas_dense(out_rel, Wo.astype(bf16), bo)


# ----------------------------------------------------------------------------
# Pure-JAX reference (mirrors the PyTorch forward exactly, float32)
# ----------------------------------------------------------------------------
def reference_forward(params, query, key, value, mask, abs_kernel, rel_kernel,
                      La, Lr):
    B, T, d_model = query.shape
    h = La + Lr
    d_k = d_model // h
    scale = 1.0 / (d_k ** 0.5)

    def dense(x, wb):
        w, b = wb
        return x @ w + b

    Q = dense(query, params["content"][0]).reshape(B, T, h, d_k).transpose(0, 2, 1, 3)
    K = dense(key, params["content"][1]).reshape(B, T, h, d_k).transpose(0, 2, 1, 3)
    V = dense(value, params["content"][2]).reshape(B, T, h, d_k).transpose(0, 2, 1, 3)

    scores = jnp.zeros((B, h, T, T), jnp.float32)
    if La > 0:
        Xq, Xk = Q[:, :La], K[:, :La]
        Pq = jnp.stack([dense(abs_kernel[i], params["abs_q"][i]) for i in range(La)], axis=1)
        Pk = jnp.stack([dense(abs_kernel[i], params["abs_k"][i]) for i in range(La)], axis=1)
        abs_scores = jnp.einsum("blid,bljd->blij", Xq + Pq, Xk + Pk)
        scores = scores.at[:, :La].add(abs_scores)
    if Lr > 0:
        Xq, Xk = Q[:, La:], K[:, La:]
        R = jnp.stack([dense(rel_kernel[i], params["rel_k"][i]) for i in range(Lr)], axis=1)
        rel_scores = jnp.einsum("blid,bljd->blij", Xq, Xk)
        rel_scores = rel_scores + jnp.einsum(
            "blid,blijd->blij", Xq + params["rel_bias"], R)
        scores = scores.at[:, La:].add(rel_scores)

    scores = scores * scale
    scores = jnp.where(mask == 0, NEG_INF, scores)
    p_attn = jax.nn.softmax(scores, axis=-1)
    x = jnp.matmul(p_attn, V)
    x = x.transpose(0, 2, 1, 3).reshape(B, T, h * d_k)
    return dense(x, params["out"])


# ----------------------------------------------------------------------------
# Deterministic parameter init (weights stored as (d_in, d_out))
# ----------------------------------------------------------------------------
def init_params(key, d_model, La, Lr):
    h = La + Lr
    d_k = d_model // h

    def lin(k, d_in, d_out):
        k1, k2 = jax.random.split(k)
        w = jax.random.normal(k1, (d_in, d_out), jnp.float32) * 0.05
        b = jax.random.normal(k2, (d_out,), jnp.float32) * 0.05
        return w, b

    keys = iter(jax.random.split(key, 3 + 2 * La + Lr + 2))
    params = {
        "content": [lin(next(keys), d_model, d_model) for _ in range(3)],
        "abs_q": [lin(next(keys), d_model, d_k) for _ in range(La)],
        "abs_k": [lin(next(keys), d_model, d_k) for _ in range(La)],
        "rel_k": [lin(next(keys), d_model, d_k) for _ in range(Lr)],
        "rel_bias": jax.random.normal(next(keys), (1, Lr, 1, d_k), jnp.float32) * 0.05,
        "out": lin(next(keys), d_model, d_model),
    }
    return params


# ----------------------------------------------------------------------------
if __name__ == "__main__":
    B, T, d_model = 2, 8, 32
    La, Lr = 2, 2
    h = La + Lr
    d_k = d_model // h

    root = jax.random.PRNGKey(0)
    k_q, k_k, k_v, k_abs, k_rel, k_mask, k_p = jax.random.split(root, 7)

    query = jax.random.normal(k_q, (B, T, d_model), jnp.float32)
    key_in = jax.random.normal(k_k, (B, T, d_model), jnp.float32)
    value = jax.random.normal(k_v, (B, T, d_model), jnp.float32)
    abs_kernel = [
        jax.random.normal(jax.random.fold_in(k_abs, i), (B, T, d_model), jnp.float32)
        for i in range(La)
    ]
    rel_kernel = [
        jax.random.normal(jax.random.fold_in(k_rel, i), (B, T, T, d_model), jnp.float32)
        for i in range(Lr)
    ]
    # causal mask, shape (B, 1, T, T)
    mask = jnp.broadcast_to(jnp.tril(jnp.ones((T, T), jnp.float32)), (B, 1, T, T))

    params = init_params(k_p, d_model, La, Lr)

    out = mixed_attention_forward(
        params, query, key_in, value, mask, abs_kernel, rel_kernel, La, Lr
    )
    out = jax.block_until_ready(out)

    ref = reference_forward(
        params, query, key_in, value, mask, abs_kernel, rel_kernel, La, Lr
    )
    assert out.shape == (B, T, d_model)
    max_err = float(jnp.max(jnp.abs(out - ref)))
    # bf16 matmul operands and bf16 intermediates (q/k/v/R/attention outputs)
    # bound the accuracy vs. the f32 reference; outputs are ~0.1 in magnitude.
    assert max_err < 2e-2, f"Pallas output mismatch vs reference: max abs err {max_err}"
    print("KERNEL_OK")
</pallas_src>

<mosaic_0001>
module attributes {stable_mosaic.version = 11 : i64} {
  func.func @_abs_pos_proj_kernel(%arg0: i32, %arg1: memref<16x32xf32, #tpu.memory_space<vmem>>, %arg2: memref<16x32xf32, #tpu.memory_space<vmem>>, %arg3: memref<16x32xf32, #tpu.memory_space<vmem>>, %arg4: memref<32x16xbf16, #tpu.memory_space<vmem>>, %arg5: memref<32x8xbf16, #tpu.memory_space<vmem>>, %arg6: memref<32x8xbf16, #tpu.memory_space<vmem>>, %arg7: memref<1x16xf32, #tpu.memory_space<vmem>>, %arg8: memref<16x16xbf16, #tpu.memory_space<vmem>>) attributes {dimension_semantics = [#tpu.dimension_semantics<parallel>], iteration_bounds = array<i64: 1>, scalar_prefetch = 0 : i64, scratch_operands = 0 : i64, tpu.core_type = #tpu.core_type<tc>, window_params = [{transform_indices = @transform_0, window_bounds = array<i64: 16, 32>}, {transform_indices = @transform_1, window_bounds = array<i64: 16, 32>}, {transform_indices = @transform_2, window_bounds = array<i64: 16, 32>}, {pipeline_mode = #tpu.pipeline_mode<synchronous>, transform_indices = @transform_3, window_bounds = array<i64: 32, 16>}, {pipeline_mode = #tpu.pipeline_mode<synchronous>, transform_indices = @transform_4, window_bounds = array<i64: 32, 8>}, {pipeline_mode = #tpu.pipeline_mode<synchronous>, transform_indices = @transform_5, window_bounds = array<i64: 32, 8>}, {pipeline_mode = #tpu.pipeline_mode<synchronous>, transform_indices = @transform_6, window_bounds = array<i64: 1, 16>}, {transform_indices = @transform_7, window_bounds = array<i64: 16, 16>}]} {
    %c0 = arith.constant 0 : index
    %c0_0 = arith.constant 0 : index
    %0 = vector.load %arg1[%c0, %c0_0] : memref<16x32xf32, #tpu.memory_space<vmem>>, vector<16x32xf32>
    %1 = arith.truncf %0 : vector<16x32xf32> to vector<16x32xbf16>
    %c0_1 = arith.constant 0 : index
    %c0_2 = arith.constant 0 : index
    %2 = vector.load %arg4[%c0_1, %c0_2] : memref<32x16xbf16, #tpu.memory_space<vmem>>, vector<32x16xbf16>
    %cst = arith.constant dense<0.000000e+00> : vector<16x16xf32>
    %3 = tpu.matmul %1, %2, %cst {dimension_numbers = #tpu.dot_dimension_numbers<[1], [0], [0], [1], [0, 0, 1, 1], [], []>} : vector<16x32xbf16>, vector<32x16xbf16>, vector<16x16xf32> -> vector<16x16xf32>
    %c0_3 = arith.constant 0 : index
    %c0_4 = arith.constant 0 : index
    %4 = vector.load %arg2[%c0_3, %c0_4] : memref<16x32xf32, #tpu.memory_space<vmem>>, vector<16x32xf32>
    %5 = arith.truncf %4 : vector<16x32xf32> to vector<16x32xbf16>
    %c0_5 = arith.constant 0 : index
    %c0_6 = arith.constant 0 : index
    %6 = vector.load %arg5[%c0_5, %c0_6] : memref<32x8xbf16, #tpu.memory_space<vmem>>, vector<32x8xbf16>
    %cst_7 = arith.constant dense<0.000000e+00> : vector<16x8xf32>
    %7 = tpu.matmul %5, %6, %cst_7 {dimension_numbers = #tpu.dot_dimension_numbers<[1], [0], [0], [1], [0, 0, 1, 1], [], []>} : vector<16x32xbf16>, vector<32x8xbf16>, vector<16x8xf32> -> vector<16x8xf32>
    %c0_8 = arith.constant 0 : index
    %c0_9 = arith.constant 0 : index
    %8 = vector.load %arg3[%c0_8, %c0_9] : memref<16x32xf32, #tpu.memory_space<vmem>>, vector<16x32xf32>
    %9 = arith.truncf %8 : vector<16x32xf32> to vector<16x32xbf16>
    %c0_10 = arith.constant 0 : index
    %c0_11 = arith.constant 0 : index
    %10 = vector.load %arg6[%c0_10, %c0_11] : memref<32x8xbf16, #tpu.memory_space<vmem>>, vector<32x8xbf16>
    %cst_12 = arith.constant dense<0.000000e+00> : vector<16x8xf32>
    %11 = tpu.matmul %9, %10, %cst_12 {dimension_numbers = #tpu.dot_dimension_numbers<[1], [0], [0], [1], [0, 0, 1, 1], [], []>} : vector<16x32xbf16>, vector<32x8xbf16>, vector<16x8xf32> -> vector<16x8xf32>
    %12 = tpu.concatenate %7, %11 in 1 : vector<16x8xf32>, vector<16x8xf32> -> vector<16x16xf32>
    %13 = arith.addf %3, %12 : vector<16x16xf32>
    %c0_13 = arith.constant 0 : index
    %c0_14 = arith.constant 0 : index
    %14 = vector.load %arg7[%c0_13, %c0_14] : memref<1x16xf32, #tpu.memory_space<vmem>>, vector<1x16xf32>
    %15 = vector.broadcast %14 : vector<1x16xf32> to vector<16x16xf32>
    %16 = arith.addf %13, %15 : vector<16x16xf32>
    %17 = arith.truncf %16 : vector<16x16xf32> to vector<16x16xbf16>
    %c0_15 = arith.constant 0 : index
    %c0_16 = arith.constant 0 : index
    %18 = vector.load %arg8[%c0_15, %c0_16] : memref<16x16xbf16, #tpu.memory_space<vmem>>, vector<16x16xbf16>
    tpu.vector_store %arg8[%c0_15, %c0_16], %17 {strides = array<i32>} : memref<16x16xbf16, #tpu.memory_space<vmem>>, vector<16x16xbf16>,
    return
  }
  func.func @transform_0(%arg0: i32) -> (i32, i32) {
    %c0_i32 = arith.constant 0 : i32
    %c0_i32_0 = arith.constant 0 : i32
    return %arg0, %c0_i32 : i32, i32
  }
  func.func @transform_1(%arg0: i32) -> (i32, i32) {
    %c0_i32 = arith.constant 0 : i32
    %c0_i32_0 = arith.constant 0 : i32
    return %arg0, %c0_i32 : i32, i32
  }
  func.func @transform_2(%arg0: i32) -> (i32, i32) {
    %c0_i32 = arith.constant 0 : i32
    %c0_i32_0 = arith.constant 0 : i32
    return %arg0, %c0_i32 : i32, i32
  }
  func.func @transform_3(%arg0: i32) -> (i32, i32) {
    %c0_i32 = arith.constant 0 : i32
    %c0_i32_0 = arith.constant 0 : i32
    %c0_i32_1 = arith.constant 0 : i32
    return %c0_i32, %c0_i32_0 : i32, i32
  }
  func.func @transform_4(%arg0: i32) -> (i32, i32) {
    %c0_i32 = arith.constant 0 : i32
    %c0_i32_0 = arith.constant 0 : i32
    %c0_i32_1 = arith.constant 0 : i32
    return %c0_i32, %c0_i32_0 : i32, i32
  }
  func.func @transform_5(%arg0: i32) -> (i32, i32) {
    %c0_i32 = arith.constant 0 : i32
    %c0_i32_0 = arith.constant 0 : i32
    %c0_i32_1 = arith.constant 0 : i32
    return %c0_i32, %c0_i32_0 : i32, i32
  }
  func.func @transform_6(%arg0: i32) -> (i32, i32) {
    %c0_i32 = arith.constant 0 : i32
    %c0_i32_0 = arith.constant 0 : i32
    %c0_i32_1 = arith.constant 0 : i32
    return %c0_i32, %c0_i32_0 : i32, i32
  }
  func.func @transform_7(%arg0: i32) -> (i32, i32) {
    %c0_i32 = arith.constant 0 : i32
    %c0_i32_0 = arith.constant 0 : i32
    return %arg0, %c0_i32 : i32, i32
  }
}

</mosaic_0001>

<llo_original>
// kernel: tpu_custom_call.1
$region0: #{tpu_custom_call.1}
  #allocation0 [shape = 'u32[]', space=smem, size = 0x4, offset = 0x4, fixed_abs, tag = 'smem constant byte address 0x4 - core index']
  #allocation1 [shape = 'u32[72,128]{1,0:T(1,128)}', space=vmem, size = 0x9000, scoped, tag = 'internal scratch']
  %s0 = inlined_call_operand.vmem [shape: f32[16,32], index: 0, kind: input, shape index: {}]
  %s1 = inlined_call_operand.vmem [shape: f32[16,32], index: 1, kind: input, shape index: {}]
  %s2 = inlined_call_operand.vmem [shape: f32[16,32], index: 2, kind: input, shape index: {}]
  %s3 = inlined_call_operand.vmem [shape: bf16[32,16], index: 3, kind: input, shape index: {}]
  %s4 = inlined_call_operand.vmem [shape: bf16[32,8], index: 4, kind: input, shape index: {}]
  %s5 = inlined_call_operand.vmem [shape: bf16[32,8], index: 5, kind: input, shape index: {}]
  %s6 = inlined_call_operand.vmem [shape: f32[1,16], index: 6, kind: input, shape index: {}]
  %s7 = inlined_call_operand.hbm [shape: bf16[16,16], index: 7, kind: output, shape index: {}]
  %s8 = sld [smem:[#allocation0]]
  $region38: #{tpu_custom_call.1} parent=0
    _
  %s10 = ssub.s32 1, %s8
  %s11 = scalar_select 0, %s10, %s8
  $region1: #{tpu_custom_call.1} parent=0
    #allocation2 [shape = 'u8[4096]{0}', space=vmem, size = 0x1000, scoped, tag = 'output window, operand 0, single buffered']
    #allocation3 [shape = 's32[1]{0}', space=sflag, size = 0x4, scoped, tag = 'scoped memory for tpu_custom_call.1']
    %12 = vsyncpa [#allocation3], 0
    // Predicated region
    $region2: #{tpu_custom_call.1} parent=1 // pred_check
      _
    $region3: #{tpu_custom_call.1} parent=1 // pred_check_branch
      %14 = sbr.rel (0) target = $region5
    $region4: #{tpu_custom_call.1} parent=1 // pred_region
      _
    $region5: #{tpu_custom_call.1} parent=1 // pred_fallthru
      _
    // Predicated region
    $region6: #{tpu_custom_call.1} parent=1 // pred_check
      _
    $region7: #{tpu_custom_call.1} parent=1 // pred_check_branch
      %16 = sbr.rel (0) target = $region9
    $region8: #{tpu_custom_call.1} parent=1 // pred_region
      _
    $region9: #{tpu_custom_call.1} parent=1 // pred_fallthru
      _
    // Predicated region
    $region10: #{tpu_custom_call.1} parent=1 // pred_check
      _
    $region11: #{tpu_custom_call.1} parent=1 // pred_check_branch
      %18 = sbr.rel (0) target = $region13
    $region12: #{tpu_custom_call.1} parent=1 // pred_region
      _
    $region13: #{tpu_custom_call.1} parent=1 // pred_fallthru
      _
    // Predicated region
    $region14: #{tpu_custom_call.1} parent=1 // pred_check
      _
    $region15: #{tpu_custom_call.1} parent=1 // pred_check_branch
      %20 = sbr.rel (0) target = $region17
    $region16: #{tpu_custom_call.1} parent=1 // pred_region
      _
    $region17: #{tpu_custom_call.1} parent=1 // pred_fallthru
      _
    // Predicated region
    $region18: #{tpu_custom_call.1} parent=1 // pred_check
      _
    $region19: #{tpu_custom_call.1} parent=1 // pred_check_branch
      %22 = sbr.rel (0) target = $region21
    $region20: #{tpu_custom_call.1} parent=1 // pred_region
      _
    $region21: #{tpu_custom_call.1} parent=1 // pred_fallthru
      _
    // Predicated region
    $region22: #{tpu_custom_call.1} parent=1 // pred_check
      _
    $region23: #{tpu_custom_call.1} parent=1 // pred_check_branch
      %24 = sbr.rel (0) target = $region25
    $region24: #{tpu_custom_call.1} parent=1 // pred_region
      _
    $region25: #{tpu_custom_call.1} parent=1 // pred_fallthru
      _
    // Predicated region
    $region26: #{tpu_custom_call.1} parent=1 // pred_check
      _
    $region27: #{tpu_custom_call.1} parent=1 // pred_check_branch
      %26 = sbr.rel (0) target = $region29
    $region28: #{tpu_custom_call.1} parent=1 // pred_region
      _
    $region29: #{tpu_custom_call.1} parent=1 // pred_fallthru
      _
    %v28 = vld [vmem:[%s0] sm:$0xff]
    %v29 = vld [vmem:[%s0 + $0x8] sm:$0xff]
    %v30 = vpack.c.bf16 %v29, %v28
    %v31 = vld [vmem:[%s3] sm:$0xf]
    %v32 = vld [vmem:[%s3 + $0x4] sm:$0xf]
    %v33 = vld [vmem:[%s3 + $0x8] sm:$0xf]
    %v34 = vld [vmem:[%s3 + $0xc] sm:$0xf]
    %v35 = vld [vmem:[%s1] sm:$0xff]
    %v36 = vld [vmem:[%s1 + $0x8] sm:$0xff]
    %v37 = vpack.c.bf16 %v36, %v35
    %v38 = vld [vmem:[%s4] sm:$0xf]
    %v39 = vld [vmem:[%s4 + $0x4] sm:$0xf]
    %v40 = vld [vmem:[%s4 + $0x8] sm:$0xf]
    %v41 = vld [vmem:[%s4 + $0xc] sm:$0xf]
    %v46 = vunpack.c.l.b16 %v38
    %v47 = vunpack.c.l.b16 %v39
    %v48 = vunpack.c.l.b16 %v40
    %v49 = vunpack.c.l.b16 %v41
    %v50 = vpack.c.b16 %v47, %v46
    %v51 = vpack.c.b16 %v49, %v48
    %vm54 = vcmask 261120
    %v56 = vsel %vm54, %v37, 0
    %58 = vmatpush.bf16.msra.mxu0 0
    %59 = vmatpush.bf16.msra.mxu0 0
    %60 = vmatpush.bf16.msra.mxu0 0
    %61 = vmatpush.bf16.msra.mxu0 0
    %62 = vmatpush.bf16.msra.mxu0 0
    %63 = vmatpush.bf16.msra.mxu0 0
    %64 = vmatpush.bf16.msra.mxu0 %v51
    %65 = vmatpush.bf16.msra.mxu0 %v50
    %66 = vmatmul.bf16.gmra.mxu0 %v56
    %v67 = vpop.f32.mrf.mxu0
    %v68 = vadd.f32 0.0, %v67
    %v69 = vpop.f32.mrf.mxu0
    %v70 = vadd.f32 0.0, %v69
    %71 = vdwg.mxu0
    %v72 = vld [vmem:[%s2] sm:$0xff]
    %v73 = vld [vmem:[%s2 + $0x8] sm:$0xff]
    %v74 = vpack.c.bf16 %v73, %v72
    %v75 = vld [vmem:[%s5] sm:$0xf]
    %v76 = vld [vmem:[%s5 + $0x4] sm:$0xf]
    %v77 = vld [vmem:[%s5 + $0x8] sm:$0xf]
    %v78 = vld [vmem:[%s5 + $0xc] sm:$0xf]
    %v83 = vunpack.c.l.b16 %v75
    %v84 = vunpack.c.l.b16 %v76
    %v85 = vunpack.c.l.b16 %v77
    %v86 = vunpack.c.l.b16 %v78
    %v87 = vpack.c.b16 %v84, %v83
    %v88 = vpack.c.b16 %v86, %v85
    %v92 = vsel %vm54, %v74, 0
    %94 = vmatpush.bf16.msra.mxu0 0
    %95 = vmatpush.bf16.msra.mxu0 0
    %96 = vmatpush.bf16.msra.mxu0 0
    %97 = vmatpush.bf16.msra.mxu0 0
    %98 = vmatpush.bf16.msra.mxu0 0
    %99 = vmatpush.bf16.msra.mxu0 0
    %100 = vmatpush.bf16.msra.mxu0 %v88
    %101 = vmatpush.bf16.msra.mxu0 %v87
    %102 = vmatmul.bf16.gmra.mxu0 %v92
    %v103 = vpop.f32.mrf.mxu0
    %v104 = vadd.f32 0.0, %v103
    %v105 = vpop.f32.mrf.mxu0
    %v106 = vadd.f32 0.0, %v105
    %107 = vdwg.mxu0
    %110 = vrot.lane.b32.xlu0 %v104, 8
    %v111 = vpop.permute.xlu0 %110
    %112 = vrot.lane.b32.xlu0 %v106, 8
    %v113 = vpop.permute.xlu0 %112
    %vm116 = vcmask 64512
    %v117 = vsel %vm116, %v68, %v111
    %v118 = vsel %vm116, %v70, %v113
    %v123 = vunpack.c.l.b16 %v31
    %v124 = vunpack.c.l.b16 %v32
    %v125 = vunpack.c.l.b16 %v33
    %v126 = vunpack.c.l.b16 %v34
    %v127 = vpack.c.b16 %v124, %v123
    %v128 = vpack.c.b16 %v126, %v125
    %v132 = vsel %vm54, %v30, 0
    %134 = vmatpush.bf16.msra.mxu0 0
    %135 = vmatpush.bf16.msra.mxu0 0
    %136 = vmatpush.bf16.msra.mxu0 0
    %137 = vmatpush.bf16.msra.mxu0 0
    %138 = vmatpush.bf16.msra.mxu0 0
    %139 = vmatpush.bf16.msra.mxu0 0
    %140 = vmatpush.bf16.msra.mxu0 %v128
    %141 = vmatpush.bf16.msra.mxu0 %v127
    %142 = vmatmul.bf16.gmra.mxu0 %v132
    %v143 = vpop.f32.mrf.mxu0
    %v144 = vadd.f32 %v117, %v143
    %v145 = vpop.f32.mrf.mxu0
    %v146 = vadd.f32 %v118, %v145
    %147 = vdwg.mxu0
    %v148 = vld [vmem:[%s6] sm:$0x1]
    %v150 = vperm.slane %v148, 0
    %v152 = vadd.f32 %v144, %v150
    %v153 = vadd.f32 %v146, %v150
    %v154 = vpack.c.bf16 %v152, %v152
    %v155 = vpack.c.bf16 %v153, %v153
    %vm156 = vcmask 125952
    %157 = vst.msk [vmem:[#allocation2] sm:$0xf] %vm156, %v154
    %158 = vst.msk [vmem:[#allocation2 + $0x4] sm:$0xf] %vm156, %v155
    // Predicated region
    $region30: #{tpu_custom_call.1} parent=1 // pred_check
      _
    $region31: #{tpu_custom_call.1} parent=1 // pred_check_branch
      %160 = sbr.rel (0) target = $region33
    $region32: #{tpu_custom_call.1} parent=1 // pred_region
      %162 = vsyncadd [#allocation3], 0
      %s163 = sshll.u32 [#allocation2], 4
      %s164 = int_to_ptr.vmem [resolvable:$true] %s163
      %s165 = sshll.u32 %s7, 4
      %s166 = int_to_ptr.hbm [resolvable:$true] %s165
      %171 = dma.vmem_to_hbm [thread:$0]  %s164, 128, %s166, [#allocation3], 64, 64, 4
    $region33: #{tpu_custom_call.1} parent=1 // pred_fallthru
      _
    // Predicated region
    $region34: #{tpu_custom_call.1} parent=1 // pred_check
      _
    $region35: #{tpu_custom_call.1} parent=1 // pred_check_branch
      %173 = sbr.rel (0) target = $region37
    $region36: #{tpu_custom_call.1} parent=1 // pred_region
      %175 = dma.done [#allocation3], 128
    $region37: #{tpu_custom_call.1} parent=1 // pred_fallthru
      _
    %176 = vsyncpa [#allocation3], 1

</llo_original>
